<compile_context>
chip_gen: v6e
topology: v6e:2x2x1
jax: 0.10.0
libtpu: 0.0.40
codegen_flags: <defaults>
</compile_context>

<pallas_src>
import functools

import jax
import jax.numpy as jnp
from jax.experimental import pallas as pl
from jax.experimental.pallas import tpu as pltpu


def _natural_params_kernel(x_ref, o_ref):
    # x_ref / o_ref are (2, tile_n) lane-dense tiles.
    mu = x_ref[0:1, :]          # (1, tile_n)
    s = x_ref[1:2, :]           # (1, tile_n)
    inv_s = 1.0 / s             # exact reciprocal (approx=True would break 1e-6 parity)
    o_ref[0:1, :] = mu * inv_s * inv_s   # theta0 / theta1**2
    o_ref[1:2, :] = -0.5 * inv_s         # -0.5 / theta1


@functools.partial(jax.jit, static_argnames=("tile_n",))
def true_natural_parameters_gaussian(x, *, tile_n=8192):
    """Pallas equivalent of TrueNaturalParametersComputationGaussian.forward.

    x: (N, 2) array. Returns (N, 2) array.
    """
    n = x.shape[0]
    xt = x.T  # (2, N) lane-dense layout for the kernel

    if n <= tile_n:
        # Single full-extent block (last dim == full array dim satisfies the
        # (8,128) block rule even for tiny / non-multiple-of-128 N).
        block_n = n
        grid = (1,)
    else:
        # Tile N (multiple of 128); Pallas masks the ragged last block.
        block_n = tile_n
        grid = (pl.cdiv(n, tile_n),)

    out_t = pl.pallas_call(
        _natural_params_kernel,
        out_shape=jax.ShapeDtypeStruct((2, n), x.dtype),
        grid=grid,
        in_specs=[pl.BlockSpec((2, block_n), lambda i: (0, i))],
        out_specs=pl.BlockSpec((2, block_n), lambda i: (0, i)),
        compiler_params=pltpu.CompilerParams(
            dimension_semantics=("parallel",),  # lets v7x shard tiles over both TCs
        ),
    )(xt)

    return out_t.T  # back to the reference (N, 2) layout


def _reference(x):
    return jnp.concatenate(
        [x[:, 0:1] / x[:, 1:2] ** 2, -0.5 / x[:, 1:2]], axis=1
    )


# --- unused nn.Linear(1, 1) parameters from __init__ (not used in forward) ---
# Deterministic init, kept only for parity with the PyTorch module definition.
LINEAR_WEIGHT = jnp.full((1, 1), 0.1, dtype=jnp.float32)
LINEAR_BIAS = jnp.zeros((1,), dtype=jnp.float32)
# TODO(synk): self.layer is never applied in the reference forward(), so it is
# intentionally not part of the kernel. For genuinely tiny N (like the demo
# below) plain fused XLA would also suffice; the Pallas path is what scales.


if __name__ == "__main__":
    key = jax.random.PRNGKey(0)
    k_mu, k_sigma, k_mu2, k_sigma2 = jax.random.split(key, 4)

    # Small case (single full-extent block path), consistent with the module.
    n_theta = 8
    mu = jax.random.normal(k_mu, (n_theta, 1), dtype=jnp.float32)
    # keep theta1 strictly away from zero (it is divided by)
    sigma = jnp.abs(jax.random.normal(k_sigma, (n_theta, 1), dtype=jnp.float32)) + 0.5
    x_small = jnp.concatenate([mu, sigma], axis=1)  # (8, 2)

    out_small = true_natural_parameters_gaussian(x_small)
    jax.block_until_ready(out_small)
    assert out_small.shape == (n_theta, 2)
    assert jnp.allclose(out_small, _reference(x_small), rtol=1e-6, atol=1e-6)

    # Slightly larger, non-multiple-of-tile case to exercise the tiled,
    # pipelined path (small tile_n just for the test).
    n_big = 1000
    mu2 = jax.random.normal(k_mu2, (n_big, 1), dtype=jnp.float32)
    sigma2 = jnp.abs(jax.random.normal(k_sigma2, (n_big, 1), dtype=jnp.float32)) + 0.5
    x_big = jnp.concatenate([mu2, sigma2], axis=1)  # (1000, 2)

    out_big = true_natural_parameters_gaussian(x_big, tile_n=256)
    jax.block_until_ready(out_big)
    assert out_big.shape == (n_big, 2)
    assert jnp.allclose(out_big, _reference(x_big), rtol=1e-6, atol=1e-6)

    print("KERNEL_OK")
</pallas_src>

<mosaic_0001>
module attributes {stable_mosaic.version = 11 : i64} {
  func.func @_natural_params_kernel(%arg0: i32, %arg1: memref<2x8xf32, #tpu.memory_space<vmem>>, %arg2: memref<2x8xf32, #tpu.memory_space<vmem>>) attributes {dimension_semantics = [#tpu.dimension_semantics<parallel>], iteration_bounds = array<i64: 1>, scalar_prefetch = 0 : i64, scratch_operands = 0 : i64, tpu.core_type = #tpu.core_type<tc>, window_params = [{transform_indices = @transform_0, window_bounds = array<i64: 2, 8>}, {transform_indices = @transform_1, window_bounds = array<i64: 2, 8>}]} {
    %c0 = arith.constant 0 : index
    %c0_0 = arith.constant 0 : index
    %0 = vector.load %arg1[%c0, %c0_0] : memref<2x8xf32, #tpu.memory_space<vmem>>, vector<1x8xf32>
    %c1 = arith.constant 1 : index
    %c0_1 = arith.constant 0 : index
    %1 = vector.load %arg1[%c1, %c0_1] : memref<2x8xf32, #tpu.memory_space<vmem>>, vector<1x8xf32>
    %cst = arith.constant 1.000000e+00 : f32
    %2 = vector.broadcast %cst : f32 to vector<1x8xf32>
    %3 = arith.divf %2, %1 : vector<1x8xf32>
    %4 = arith.mulf %0, %3 : vector<1x8xf32>
    %5 = arith.mulf %4, %3 : vector<1x8xf32>
    %c0_2 = arith.constant 0 : index
    %c0_3 = arith.constant 0 : index
    %6 = vector.load %arg2[%c0_2, %c0_3] : memref<2x8xf32, #tpu.memory_space<vmem>>, vector<1x8xf32>
    tpu.vector_store %arg2[%c0_2, %c0_3], %5 {strides = array<i32>} : memref<2x8xf32, #tpu.memory_space<vmem>>, vector<1x8xf32>,
    %cst_4 = arith.constant -5.000000e-01 : f32
    %7 = vector.broadcast %cst_4 : f32 to vector<1x8xf32>
    %8 = arith.mulf %7, %3 : vector<1x8xf32>
    %c1_5 = arith.constant 1 : index
    %c0_6 = arith.constant 0 : index
    %9 = vector.load %arg2[%c1_5, %c0_6] : memref<2x8xf32, #tpu.memory_space<vmem>>, vector<1x8xf32>
    tpu.vector_store %arg2[%c1_5, %c0_6], %8 {strides = array<i32>} : memref<2x8xf32, #tpu.memory_space<vmem>>, vector<1x8xf32>,
    return
  }
  func.func @transform_0(%arg0: i32) -> (i32, i32) {
    %c0_i32 = arith.constant 0 : i32
    %c0_i32_0 = arith.constant 0 : i32
    return %c0_i32, %arg0 : i32, i32
  }
  func.func @transform_1(%arg0: i32) -> (i32, i32) {
    %c0_i32 = arith.constant 0 : i32
    %c0_i32_0 = arith.constant 0 : i32
    return %c0_i32, %arg0 : i32, i32
  }
}

</mosaic_0001>

<llo_original>
// kernel: true_natural_parameters_gaussian.1
$region0: #{true_natural_parameters_gaussian.1}
  #allocation0 [shape = 'u32[]', space=smem, size = 0x4, offset = 0x4, fixed_abs, tag = 'smem constant byte address 0x4 - core index']
  #allocation1 [shape = 'u32[144,128]{1,0:T(1,128)}', space=vmem, size = 0x12000, scoped, tag = 'internal scratch']
  %s0 = inlined_call_operand.hbm [shape: f32[2,8], index: 0, kind: input, shape index: {}]
  %s1 = inlined_call_operand.hbm [shape: f32[2,8], index: 1, kind: output, shape index: {}]
  %s2 = sld [smem:[#allocation0]]
  $region18: #{true_natural_parameters_gaussian.1} parent=0
    _
  %s4 = ssub.s32 1, %s2
  %s5 = scalar_select 0, %s4, %s2
  $region1: #{true_natural_parameters_gaussian.1} parent=0
    #allocation2 [shape = 'u8[1024]{0}', space=vmem, size = 0x400, scoped, tag = 'input window, operand 0, single buffered']
    #allocation3 [shape = 's32[1]{0}', space=sflag, size = 0x4, scoped, tag = 'scoped memory for true_natural_parameters_gaussian.1']
    #allocation4 [shape = 's32[1]{0}', space=sflag, size = 0x4, scoped, tag = 'scoped memory for true_natural_parameters_gaussian.1']
    #allocation5 [shape = 'u8[1024]{0}', space=vmem, size = 0x400, scoped, tag = 'output window, operand 0, single buffered']
    %6 = vsyncpa [#allocation3], 0
    %7 = vsyncpa [#allocation4], 0
    // Predicated region
    $region2: #{true_natural_parameters_gaussian.1} parent=1 // pred_check
      _
    $region3: #{true_natural_parameters_gaussian.1} parent=1 // pred_check_branch
      %9 = sbr.rel (0) target = $region5
    $region4: #{true_natural_parameters_gaussian.1} parent=1 // pred_region
      %s11 = ssub.s32 32, 32
      %12 = vsyncadd [#allocation3], %s11
      %s14 = sshll.u32 [#allocation2], 4
      %s15 = int_to_ptr.vmem [resolvable:$true] %s14
      %17 = dma.hbm_to_vmem [thread:$0]  %s0, 32, %s15, [#allocation3]
    $region5: #{true_natural_parameters_gaussian.1} parent=1 // pred_fallthru
      _
    // Predicated region
    $region6: #{true_natural_parameters_gaussian.1} parent=1 // pred_check
      _
    $region7: #{true_natural_parameters_gaussian.1} parent=1 // pred_check_branch
      %19 = sbr.rel (0) target = $region9
    $region8: #{true_natural_parameters_gaussian.1} parent=1 // pred_region
      %20 = dma.done [#allocation3], 32
    $region9: #{true_natural_parameters_gaussian.1} parent=1 // pred_fallthru
      _
    %v21 = vld [vmem:[#allocation2] sm:$0x1]
    %v22 = vld [vmem:[#allocation2 + $0x1] sm:$0x1]
    %v23 = vrcp.pop %v22
    %v24 = vmul.f32 1.0, %v23
    %v25 = vmul.f32 %v21, %v24
    %v26 = vmul.f32 %v25, %v24
    %vm27 = vcmask 57344
    %28 = vst.msk [vmem:[#allocation5] sm:$0x1] %vm27, %v26
    %v29 = vmul.f32 %v24, -0.5
    %30 = vst.msk [vmem:[#allocation5 + $0x1] sm:$0x1] %vm27, %v29
    // Predicated region
    $region10: #{true_natural_parameters_gaussian.1} parent=1 // pred_check
      _
    $region11: #{true_natural_parameters_gaussian.1} parent=1 // pred_check_branch
      %32 = sbr.rel (0) target = $region13
    $region12: #{true_natural_parameters_gaussian.1} parent=1 // pred_region
      %s34 = ssub.s32 32, 32
      %35 = vsyncadd [#allocation4], %s34
      %s37 = sshll.u32 [#allocation5], 4
      %s38 = int_to_ptr.vmem [resolvable:$true] %s37
      %40 = dma.vmem_to_hbm [thread:$0]  %s38, 32, %s1, [#allocation4]
    $region13: #{true_natural_parameters_gaussian.1} parent=1 // pred_fallthru
      _
    // Predicated region
    $region14: #{true_natural_parameters_gaussian.1} parent=1 // pred_check
      _
    $region15: #{true_natural_parameters_gaussian.1} parent=1 // pred_check_branch
      %42 = sbr.rel (0) target = $region17
    $region16: #{true_natural_parameters_gaussian.1} parent=1 // pred_region
      %43 = dma.done [#allocation4], 32
    $region17: #{true_natural_parameters_gaussian.1} parent=1 // pred_fallthru
      _
    %44 = vsyncpa [#allocation3], 1
    %45 = vsyncpa [#allocation4], 1

</llo_original>
